<compile_context>
chip_gen: v7x
topology: tpu7x:2x2x1
jax: 0.10.0
libtpu: 0.0.40
codegen_flags: <defaults>
</compile_context>

<pallas_src>
import numpy as np
import jax
import jax.numpy as jnp
from jax.experimental import pallas as pl
from jax.experimental.pallas import tpu as pltpu

# ---------------- hyperparameters (small but consistent with __init__) ------
ENC_DIM = 16
FEATURE_DIM = 32   # defined by the module but unused by its base-class compute
HIDDEN_DIM = 32    # unused
LAYER = 2          # unused
NSPK = 2           # unused
SR = 1000
WIN_LEN = 4        # ms -> window = 4 samples
CONTEXT_LEN = 16   # ms -> context = 16 samples

WINDOW = int(SR * WIN_LEN / 1000)          # 4
CONTEXT = int(SR * CONTEXT_LEN / 1000)     # 16
STRIDE = WINDOW // 2                       # 2
FILTER_DIM = 2 * CONTEXT + 1               # 33
KSIZE = 2 * CONTEXT + WINDOW               # 36 (encoder kernel / chunk length)
EPS = 1e-8


def _cdiv(a, b):
    return -(-a // b)


def _round_up(a, b):
    return _cdiv(a, b) * b


# ---------------- plain-JAX glue: padding --------------------------------------
def pad_input(x, window):
    B, nmic, T = x.shape
    stride = window // 2
    rest = window - (stride + T % window) % window
    if rest > 0:
        x = jnp.concatenate([x, jnp.zeros((B, nmic, rest), x.dtype)], axis=2)
    pad_aux = jnp.zeros((B, nmic, stride), x.dtype)
    x = jnp.concatenate([pad_aux, x, pad_aux], axis=2)
    return x, rest


# (kept only for the pure-JAX reference path; the kernel streams the signal and
#  never materializes the 18x-inflated chunk tensor)
def seg_signal_context(x, window, context):
    inp, rest = pad_input(x, window)
    B, nmic, nsample = inp.shape
    stride = window // 2
    pad_ctx = jnp.zeros((B, nmic, context), inp.dtype)
    inp = jnp.concatenate([pad_ctx, inp, pad_ctx], axis=2)
    nchunk = 2 * nsample // window - 1
    begin = np.arange(nchunk) * stride
    idx = begin[:, None] + np.arange(2 * context + window)[None, :]
    chunks = inp[:, :, idx]                                          # (B, nmic, nchunk, K)
    center = chunks[:, :, :, context:context + window]
    return center, chunks, rest


# ---------------- fused Pallas kernel: windows + conv + GN + NCC ---------------
def _fused_kernel(ph_ref, ph0_ref, wt_ref, band_ref, g_ref, b_ref, enc_ref, cos_ref):
    # ph_ref / ph0_ref : (2, Lh_pad) phase-split padded signal, own mic / mic 0
    #                    ph[p, i] = sig[2*i + p]
    # wt_ref  : (E, K)   encoder weight (transposed)
    # band_ref: (33, K)  banded ones (for segment energies on the MXU)
    # g_ref/b_ref: (E, 1) GroupNorm affine
    # enc_ref : (E, nt)  cos_ref: (33, nt)   -- chunk index on the lane axis
    nt = enc_ref.shape[-1]
    halo = nt + 128                                   # covers the +17-lane Hankel halo
    c0 = pl.multiple_of(pl.program_id(2) * nt, 128)

    pb = ph_ref[:, pl.ds(c0, halo)]                   # (2, nt+128), one dynamic slice
    pb0 = ph0_ref[:, pl.ds(c0, halo)]

    # Hankel window matrix built in VMEM: x[k, c] = sig[2*(c0+c) + k] = pb[k%2, c + k//2]
    x = jnp.concatenate(
        [pb[k % 2:k % 2 + 1, k // 2:k // 2 + nt] for k in range(KSIZE)], axis=0)   # (K, nt)

    # --- encoder conv (kernel length == chunk length -> MXU matmul) + GroupNorm(1, E)
    y = jnp.dot(wt_ref[...], x, preferred_element_type=jnp.float32)   # (E, nt)
    mu = jnp.mean(y, axis=0, keepdims=True)
    var = jnp.mean(jnp.square(y - mu), axis=0, keepdims=True)         # biased var (torch GN)
    enc_ref[...] = (y - mu) * jax.lax.rsqrt(var + EPS) * g_ref[...] + b_ref[...]

    # --- target = reference-mic (mic 0) center frame: tgt[j, c] = sig0[2c + CONTEXT + j]
    t = [pb0[j % 2:j % 2 + 1, CONTEXT // 2 + j // 2:CONTEXT // 2 + j // 2 + nt]
         for j in range(WINDOW)]                                      # 4 x (1, nt)
    tgt_ss = t[0] * t[0] + t[1] * t[1] + t[2] * t[2] + t[3] * t[3]    # (1, nt)

    # --- sliding-window NCC: segment energies on the MXU, numerator as 4 wide FMAs
    seg_ss = jnp.dot(band_ref[...], x * x, preferred_element_type=jnp.float32)   # (33, nt)
    num = x[0:33] * t[0] + x[1:34] * t[1] + x[2:35] * t[2] + x[3:36] * t[3]
    denom = (jnp.sqrt(seg_ss) + EPS) * (jnp.sqrt(tgt_ss) + EPS)       # eps placement == reference
    cos_ref[...] = num / denom


# ---------------- composed "forward" -------------------------------------------
# TODO(synk): the original forward() body is `pass` (base class); here we compose
# the module's own submodules/methods (segmentation -> encoder+enc_LN -> seq_cos_sim).
def fasnet_base_forward(x, num_mic, params, *, chunk_tile=512):
    del num_mic  # zero for fixed-geometry configuration; unused by base compute
    B, nmic, _ = x.shape
    inp, rest = pad_input(x, WINDOW)
    nsample = inp.shape[-1]
    nchunk = 2 * nsample // WINDOW - 1

    # context pad, then split into the 2 sample phases: phases[..., p, i] = sig[..., 2i + p]
    pad_ctx = jnp.zeros((B, nmic, CONTEXT), inp.dtype)
    sig = jnp.concatenate([pad_ctx, inp, pad_ctx], axis=-1).astype(jnp.float32)
    lhalf = sig.shape[-1] // 2
    phases = sig.reshape(B, nmic, lhalf, 2).transpose(0, 1, 3, 2)      # (B, nmic, 2, lhalf)

    # chunk tile on the lane axis: multiple of 128, sized to minimize padding waste
    n_ct = _cdiv(nchunk, chunk_tile)
    nt = _round_up(_cdiv(nchunk, n_ct), 128)
    n_ct = _cdiv(nchunk, nt)
    nchunk_pad = n_ct * nt
    lh_pad = nchunk_pad + 128                   # room for the Hankel halo; multiple of 128
    phases = jnp.pad(phases, ((0, 0), (0, 0), (0, 0), (0, lh_pad - lhalf)))

    wt = params["w"].astype(jnp.float32).T                              # (E, K)
    gamma = params["gamma"].astype(jnp.float32).reshape(ENC_DIM, 1)
    beta = params["beta"].astype(jnp.float32).reshape(ENC_DIM, 1)
    # banded ones: band[t, k] = 1 iff t <= k < t + WINDOW  (segment energy as a matmul)
    band = jnp.asarray(
        (np.arange(KSIZE)[None, :] >= np.arange(FILTER_DIM)[:, None]) &
        (np.arange(KSIZE)[None, :] < np.arange(FILTER_DIM)[:, None] + WINDOW),
        dtype=jnp.float32)                                              # (33, 36)

    enc_t, cos_t = pl.pallas_call(
        _fused_kernel,
        out_shape=(jax.ShapeDtypeStruct((B, nmic, ENC_DIM, nchunk_pad), jnp.float32),
                   jax.ShapeDtypeStruct((B, nmic, FILTER_DIM, nchunk_pad), jnp.float32)),
        grid=(B, nmic, n_ct),
        in_specs=[
            # own-mic phases: resident across the (innermost) chunk-tile axis
            pl.BlockSpec((None, None, 2, lh_pad), lambda b, m, c: (b, m, 0, 0)),
            # reference-mic (mic 0) phases: same array, indexed via the index_map
            pl.BlockSpec((None, None, 2, lh_pad), lambda b, m, c: (b, 0, 0, 0)),
            pl.BlockSpec((ENC_DIM, KSIZE), lambda b, m, c: (0, 0)),
            pl.BlockSpec((FILTER_DIM, KSIZE), lambda b, m, c: (0, 0)),
            pl.BlockSpec((ENC_DIM, 1), lambda b, m, c: (0, 0)),
            pl.BlockSpec((ENC_DIM, 1), lambda b, m, c: (0, 0)),
        ],
        out_specs=(
            pl.BlockSpec((None, None, ENC_DIM, nt), lambda b, m, c: (b, m, 0, c)),
            pl.BlockSpec((None, None, FILTER_DIM, nt), lambda b, m, c: (b, m, 0, c)),
        ),
        compiler_params=pltpu.CompilerParams(
            dimension_semantics=("parallel", "parallel", "arbitrary")),
    )(phases, phases, wt, band, gamma, beta)

    # TODO(synk): downstream FaSNet consumers could take the lane-dense channel-major
    # (..., E, nchunk) / (..., 33, nchunk) slabs directly and skip this transpose pass.
    enc = jnp.transpose(enc_t[..., :nchunk], (0, 1, 3, 2))              # (B, nmic, nchunk, E)
    cos = jnp.transpose(cos_t[..., :nchunk], (0, 1, 3, 2))              # (B, nmic, nchunk, 33)
    return enc, cos, rest


# ---------------- pure-JAX reference for correctness ---------------------------
def reference_forward(x, params):
    center, chunks, rest = seg_signal_context(x, WINDOW, CONTEXT)
    B, nmic, nchunk, K = chunks.shape
    y = chunks.reshape(-1, K) @ params["w"]
    mean = y.mean(axis=1, keepdims=True)
    var = ((y - mean) ** 2).mean(axis=1, keepdims=True)
    yn = (y - mean) / jnp.sqrt(var + EPS)
    enc = (yn * params["gamma"] + params["beta"]).reshape(B, nmic, nchunk, ENC_DIM)

    ref = chunks.reshape(B * nmic, nchunk, K)
    tgt = jnp.broadcast_to(center[:, :1], (B, nmic, nchunk, WINDOW)).reshape(
        B * nmic, nchunk, WINDOW)
    tnorm = jnp.sqrt(jnp.sum(tgt * tgt, -1)) + EPS
    cols = []
    for t in range(FILTER_DIM):
        seg = ref[:, :, t:t + WINDOW]
        numt = jnp.sum(seg * tgt, -1)
        rnorm = jnp.sqrt(jnp.sum(seg * seg, -1)) + EPS
        cols.append(numt / (rnorm * tnorm))
    cos = jnp.stack(cols, -1).reshape(B, nmic, nchunk, FILTER_DIM)
    return enc, cos, rest


# ---------------- main ----------------------------------------------------------
if __name__ == "__main__":
    key = jax.random.PRNGKey(0)
    k_x, k_w, k_g, k_b = jax.random.split(key, 4)

    B, NMIC, T = 2, 4, 16
    x = jax.random.normal(k_x, (B, NMIC, T), dtype=jnp.float32)
    num_mic = jnp.zeros((B,), dtype=jnp.int32)

    # deterministic parameters: Conv1d weight (enc_dim, 1, K) stored as (K, enc_dim);
    # GroupNorm affine gamma/beta stored as (1, enc_dim)
    params = {
        "w": 0.1 * jax.random.normal(k_w, (KSIZE, ENC_DIM), dtype=jnp.float32),
        "gamma": 1.0 + 0.1 * jax.random.normal(k_g, (1, ENC_DIM), dtype=jnp.float32),
        "beta": 0.1 * jax.random.normal(k_b, (1, ENC_DIM), dtype=jnp.float32),
    }

    enc, cos, rest = fasnet_base_forward(x, num_mic, params)
    jax.block_until_ready((enc, cos))

    enc_ref, cos_ref, rest_ref = reference_forward(x, params)
    assert enc.shape == (B, NMIC, 10, ENC_DIM)
    assert cos.shape == (B, NMIC, 10, FILTER_DIM)
    assert rest == rest_ref
    np.testing.assert_allclose(np.asarray(enc), np.asarray(enc_ref), rtol=1e-4, atol=1e-4)
    np.testing.assert_allclose(np.asarray(cos), np.asarray(cos_ref), rtol=1e-4, atol=1e-4)

    print("KERNEL_OK")
</pallas_src>

<mosaic_0001>
module attributes {stable_mosaic.version = 11 : i64} {
  func.func @_fused_kernel(%arg0: i32, %arg1: i32, %arg2: i32, %arg3: memref<1x1x2x256xf32, #tpu.memory_space<vmem>>, %arg4: memref<1x1x2x256xf32, #tpu.memory_space<vmem>>, %arg5: memref<16x36xf32, #tpu.memory_space<vmem>>, %arg6: memref<33x36xf32, #tpu.memory_space<vmem>>, %arg7: memref<16x1xf32, #tpu.memory_space<vmem>>, %arg8: memref<16x1xf32, #tpu.memory_space<vmem>>, %arg9: memref<1x1x16x128xf32, #tpu.memory_space<vmem>>, %arg10: memref<1x1x33x128xf32, #tpu.memory_space<vmem>>) attributes {dimension_semantics = [#tpu.dimension_semantics<parallel>, #tpu.dimension_semantics<parallel>, #tpu.dimension_semantics<arbitrary>], iteration_bounds = array<i64: 2, 4, 1>, scalar_prefetch = 0 : i64, scratch_operands = 0 : i64, tpu.core_type = #tpu.core_type<tc>, window_params = [{transform_indices = @transform_0, window_bounds = array<i64: 1, 1, 2, 256>}, {transform_indices = @transform_1, window_bounds = array<i64: 1, 1, 2, 256>}, {pipeline_mode = #tpu.pipeline_mode<synchronous>, transform_indices = @transform_2, window_bounds = array<i64: 16, 36>}, {pipeline_mode = #tpu.pipeline_mode<synchronous>, transform_indices = @transform_3, window_bounds = array<i64: 33, 36>}, {pipeline_mode = #tpu.pipeline_mode<synchronous>, transform_indices = @transform_4, window_bounds = array<i64: 16, 1>}, {pipeline_mode = #tpu.pipeline_mode<synchronous>, transform_indices = @transform_5, window_bounds = array<i64: 16, 1>}, {transform_indices = @transform_6, window_bounds = array<i64: 1, 1, 16, 128>}, {transform_indices = @transform_7, window_bounds = array<i64: 1, 1, 33, 128>}]} {
    %c128_i32 = arith.constant 128 : i32
    %0 = arith.muli %arg2, %c128_i32 : i32
    %1 = tpu.assume_multiple %0, 128 : i32
    %c0 = arith.constant 0 : index
    %c0_0 = arith.constant 0 : index
    %c0_1 = arith.constant 0 : index
    %2 = arith.index_cast %1 : i32 to index
    %3 = vector.load %arg3[%c0, %c0_0, %c0_1, %2] : memref<1x1x2x256xf32, #tpu.memory_space<vmem>>, vector<1x1x2x256xf32>
    %4 = vector.shape_cast %3 : vector<1x1x2x256xf32> to vector<2x256xf32>
    %c0_2 = arith.constant 0 : index
    %c0_3 = arith.constant 0 : index
    %c0_4 = arith.constant 0 : index
    %5 = arith.index_cast %1 : i32 to index
    %6 = vector.load %arg4[%c0_2, %c0_3, %c0_4, %5] : memref<1x1x2x256xf32, #tpu.memory_space<vmem>>, vector<1x1x2x256xf32>
    %7 = vector.shape_cast %6 : vector<1x1x2x256xf32> to vector<2x256xf32>
    %8 = vector.extract_strided_slice %4 {offsets = [0, 0], sizes = [1, 128], strides = [1, 1]} : vector<2x256xf32> to vector<1x128xf32>
    %9 = vector.extract_strided_slice %4 {offsets = [1, 0], sizes = [1, 128], strides = [1, 1]} : vector<2x256xf32> to vector<1x128xf32>
    %10 = vector.extract_strided_slice %4 {offsets = [0, 1], sizes = [1, 128], strides = [1, 1]} : vector<2x256xf32> to vector<1x128xf32>
    %11 = vector.extract_strided_slice %4 {offsets = [1, 1], sizes = [1, 128], strides = [1, 1]} : vector<2x256xf32> to vector<1x128xf32>
    %12 = vector.extract_strided_slice %4 {offsets = [0, 2], sizes = [1, 128], strides = [1, 1]} : vector<2x256xf32> to vector<1x128xf32>
    %13 = vector.extract_strided_slice %4 {offsets = [1, 2], sizes = [1, 128], strides = [1, 1]} : vector<2x256xf32> to vector<1x128xf32>
    %14 = vector.extract_strided_slice %4 {offsets = [0, 3], sizes = [1, 128], strides = [1, 1]} : vector<2x256xf32> to vector<1x128xf32>
    %15 = vector.extract_strided_slice %4 {offsets = [1, 3], sizes = [1, 128], strides = [1, 1]} : vector<2x256xf32> to vector<1x128xf32>
    %16 = vector.extract_strided_slice %4 {offsets = [0, 4], sizes = [1, 128], strides = [1, 1]} : vector<2x256xf32> to vector<1x128xf32>
    %17 = vector.extract_strided_slice %4 {offsets = [1, 4], sizes = [1, 128], strides = [1, 1]} : vector<2x256xf32> to vector<1x128xf32>
    %18 = vector.extract_strided_slice %4 {offsets = [0, 5], sizes = [1, 128], strides = [1, 1]} : vector<2x256xf32> to vector<1x128xf32>
    %19 = vector.extract_strided_slice %4 {offsets = [1, 5], sizes = [1, 128], strides = [1, 1]} : vector<2x256xf32> to vector<1x128xf32>
    %20 = vector.extract_strided_slice %4 {offsets = [0, 6], sizes = [1, 128], strides = [1, 1]} : vector<2x256xf32> to vector<1x128xf32>
    %21 = vector.extract_strided_slice %4 {offsets = [1, 6], sizes = [1, 128], strides = [1, 1]} : vector<2x256xf32> to vector<1x128xf32>
    %22 = vector.extract_strided_slice %4 {offsets = [0, 7], sizes = [1, 128], strides = [1, 1]} : vector<2x256xf32> to vector<1x128xf32>
    %23 = vector.extract_strided_slice %4 {offsets = [1, 7], sizes = [1, 128], strides = [1, 1]} : vector<2x256xf32> to vector<1x128xf32>
    %24 = vector.extract_strided_slice %4 {offsets = [0, 8], sizes = [1, 128], strides = [1, 1]} : vector<2x256xf32> to vector<1x128xf32>
    %25 = vector.extract_strided_slice %4 {offsets = [1, 8], sizes = [1, 128], strides = [1, 1]} : vector<2x256xf32> to vector<1x128xf32>
    %26 = vector.extract_strided_slice %4 {offsets = [0, 9], sizes = [1, 128], strides = [1, 1]} : vector<2x256xf32> to vector<1x128xf32>
    %27 = vector.extract_strided_slice %4 {offsets = [1, 9], sizes = [1, 128], strides = [1, 1]} : vector<2x256xf32> to vector<1x128xf32>
    %28 = vector.extract_strided_slice %4 {offsets = [0, 10], sizes = [1, 128], strides = [1, 1]} : vector<2x256xf32> to vector<1x128xf32>
    %29 = vector.extract_strided_slice %4 {offsets = [1, 10], sizes = [1, 128], strides = [1, 1]} : vector<2x256xf32> to vector<1x128xf32>
    %30 = vector.extract_strided_slice %4 {offsets = [0, 11], sizes = [1, 128], strides = [1, 1]} : vector<2x256xf32> to vector<1x128xf32>
    %31 = vector.extract_strided_slice %4 {offsets = [1, 11], sizes = [1, 128], strides = [1, 1]} : vector<2x256xf32> to vector<1x128xf32>
    %32 = vector.extract_strided_slice %4 {offsets = [0, 12], sizes = [1, 128], strides = [1, 1]} : vector<2x256xf32> to vector<1x128xf32>
    %33 = vector.extract_strided_slice %4 {offsets = [1, 12], sizes = [1, 128], strides = [1, 1]} : vector<2x256xf32> to vector<1x128xf32>
    %34 = vector.extract_strided_slice %4 {offsets = [0, 13], sizes = [1, 128], strides = [1, 1]} : vector<2x256xf32> to vector<1x128xf32>
    %35 = vector.extract_strided_slice %4 {offsets = [1, 13], sizes = [1, 128], strides = [1, 1]} : vector<2x256xf32> to vector<1x128xf32>
    %36 = vector.extract_strided_slice %4 {offsets = [0, 14], sizes = [1, 128], strides = [1, 1]} : vector<2x256xf32> to vector<1x128xf32>
    %37 = vector.extract_strided_slice %4 {offsets = [1, 14], sizes = [1, 128], strides = [1, 1]} : vector<2x256xf32> to vector<1x128xf32>
    %38 = vector.extract_strided_slice %4 {offsets = [0, 15], sizes = [1, 128], strides = [1, 1]} : vector<2x256xf32> to vector<1x128xf32>
    %39 = vector.extract_strided_slice %4 {offsets = [1, 15], sizes = [1, 128], strides = [1, 1]} : vector<2x256xf32> to vector<1x128xf32>
    %40 = vector.extract_strided_slice %4 {offsets = [0, 16], sizes = [1, 128], strides = [1, 1]} : vector<2x256xf32> to vector<1x128xf32>
    %41 = vector.extract_strided_slice %4 {offsets = [1, 16], sizes = [1, 128], strides = [1, 1]} : vector<2x256xf32> to vector<1x128xf32>
    %42 = vector.extract_strided_slice %4 {offsets = [0, 17], sizes = [1, 128], strides = [1, 1]} : vector<2x256xf32> to vector<1x128xf32>
    %43 = vector.extract_strided_slice %4 {offsets = [1, 17], sizes = [1, 128], strides = [1, 1]} : vector<2x256xf32> to vector<1x128xf32>
    %44 = tpu.concatenate %8, %9, %10, %11, %12, %13, %14, %15, %16, %17, %18, %19, %20, %21, %22, %23 in 0 : vector<1x128xf32>, vector<1x128xf32>, vector<1x128xf32>, vector<1x128xf32>, vector<1x128xf32>, vector<1x128xf32>, vector<1x128xf32>, vector<1x128xf32>, vector<1x128xf32>, vector<1x128xf32>, vector<1x128xf32>, vector<1x128xf32>, vector<1x128xf32>, vector<1x128xf32>, vector<1x128xf32>, vector<1x128xf32> -> vector<16x128xf32>
    %45 = tpu.concatenate %24, %25, %26, %27, %28, %29, %30, %31, %32, %33, %34, %35, %36, %37, %38, %39 in 0 : vector<1x128xf32>, vector<1x128xf32>, vector<1x128xf32>, vector<1x128xf32>, vector<1x128xf32>, vector<1x128xf32>, vector<1x128xf32>, vector<1x128xf32>, vector<1x128xf32>, vector<1x128xf32>, vector<1x128xf32>, vector<1x128xf32>, vector<1x128xf32>, vector<1x128xf32>, vector<1x128xf32>, vector<1x128xf32> -> vector<16x128xf32>
    %46 = tpu.concatenate %40, %41, %42, %43 in 0 : vector<1x128xf32>, vector<1x128xf32>, vector<1x128xf32>, vector<1x128xf32> -> vector<4x128xf32>
    %47 = tpu.concatenate %44, %45, %46 in 0 : vector<16x128xf32>, vector<16x128xf32>, vector<4x128xf32> -> vector<36x128xf32>
    %c0_5 = arith.constant 0 : index
    %c0_6 = arith.constant 0 : index
    %48 = vector.load %arg5[%c0_5, %c0_6] : memref<16x36xf32, #tpu.memory_space<vmem>>, vector<16x36xf32>
    %cst = arith.constant dense<0.000000e+00> : vector<16x128xf32>
    %49 = tpu.matmul %48, %47, %cst {dimension_numbers = #tpu.dot_dimension_numbers<[1], [0], [0], [1], [0, 0, 1, 1], [], []>} : vector<16x36xf32>, vector<36x128xf32>, vector<16x128xf32> -> vector<16x128xf32>
    %cst_7 = arith.constant dense<0.000000e+00> : vector<128xf32>
    %50 = vector.multi_reduction <add>, %49, %cst_7 [0] : vector<16x128xf32> to vector<128xf32>
    %51 = vector.shape_cast %50 : vector<128xf32> to vector<1x128xf32>
    %cst_8 = arith.constant 1.600000e+01 : f32
    %52 = vector.broadcast %cst_8 : f32 to vector<1x128xf32>
    %53 = arith.divf %51, %52 : vector<1x128xf32>
    %54 = vector.broadcast %53 : vector<1x128xf32> to vector<16x128xf32>
    %55 = arith.subf %49, %54 : vector<16x128xf32>
    %56 = arith.mulf %55, %55 : vector<16x128xf32>
    %cst_9 = arith.constant dense<0.000000e+00> : vector<128xf32>
    %57 = vector.multi_reduction <add>, %56, %cst_9 [0] : vector<16x128xf32> to vector<128xf32>
    %58 = vector.shape_cast %57 : vector<128xf32> to vector<1x128xf32>
    %cst_10 = arith.constant 1.600000e+01 : f32
    %59 = vector.broadcast %cst_10 : f32 to vector<1x128xf32>
    %60 = arith.divf %58, %59 : vector<1x128xf32>
    %61 = vector.broadcast %53 : vector<1x128xf32> to vector<16x128xf32>
    %62 = arith.subf %49, %61 : vector<16x128xf32>
    %cst_11 = arith.constant 9.99999993E-9 : f32
    %63 = vector.broadcast %cst_11 : f32 to vector<1x128xf32>
    %64 = arith.addf %60, %63 : vector<1x128xf32>
    %65 = math.rsqrt %64 : vector<1x128xf32>
    %66 = vector.broadcast %65 : vector<1x128xf32> to vector<16x128xf32>
    %67 = arith.mulf %62, %66 : vector<16x128xf32>
    %c0_12 = arith.constant 0 : index
    %c0_13 = arith.constant 0 : index
    %68 = vector.load %arg7[%c0_12, %c0_13] : memref<16x1xf32, #tpu.memory_space<vmem>>, vector<16x1xf32>
    %69 = vector.broadcast %68 : vector<16x1xf32> to vector<16x128xf32>
    %70 = arith.mulf %67, %69 : vector<16x128xf32>
    %c0_14 = arith.constant 0 : index
    %c0_15 = arith.constant 0 : index
    %71 = vector.load %arg8[%c0_14, %c0_15] : memref<16x1xf32, #tpu.memory_space<vmem>>, vector<16x1xf32>
    %72 = vector.broadcast %71 : vector<16x1xf32> to vector<16x128xf32>
    %73 = arith.addf %70, %72 : vector<16x128xf32>
    %c0_16 = arith.constant 0 : index
    %c0_17 = arith.constant 0 : index
    %c0_18 = arith.constant 0 : index
    %c0_19 = arith.constant 0 : index
    %74 = vector.load %arg9[%c0_16, %c0_17, %c0_18, %c0_19] : memref<1x1x16x128xf32, #tpu.memory_space<vmem>>, vector<1x1x16x128xf32>
    %75 = vector.shape_cast %74 : vector<1x1x16x128xf32> to vector<16x128xf32>
    %76 = vector.shape_cast %73 : vector<16x128xf32> to vector<1x1x16x128xf32>
    tpu.vector_store %arg9[%c0_16, %c0_17, %c0_18, %c0_19], %76 {strides = array<i32>} : memref<1x1x16x128xf32, #tpu.memory_space<vmem>>, vector<1x1x16x128xf32>,
    %77 = vector.extract_strided_slice %7 {offsets = [0, 8], sizes = [1, 128], strides = [1, 1]} : vector<2x256xf32> to vector<1x128xf32>
    %78 = vector.extract_strided_slice %7 {offsets = [1, 8], sizes = [1, 128], strides = [1, 1]} : vector<2x256xf32> to vector<1x128xf32>
    %79 = vector.extract_strided_slice %7 {offsets = [0, 9], sizes = [1, 128], strides = [1, 1]} : vector<2x256xf32> to vector<1x128xf32>
    %80 = vector.extract_strided_slice %7 {offsets = [1, 9], sizes = [1, 128], strides = [1, 1]} : vector<2x256xf32> to vector<1x128xf32>
    %81 = arith.mulf %77, %77 : vector<1x128xf32>
    %82 = arith.mulf %78, %78 : vector<1x128xf32>
    %83 = arith.addf %81, %82 : vector<1x128xf32>
    %84 = arith.mulf %79, %79 : vector<1x128xf32>
    %85 = arith.addf %83, %84 : vector<1x128xf32>
    %86 = arith.mulf %80, %80 : vector<1x128xf32>
    %87 = arith.addf %85, %86 : vector<1x128xf32>
    %c0_20 = arith.constant 0 : index
    %c0_21 = arith.constant 0 : index
    %88 = vector.load %arg6[%c0_20, %c0_21] : memref<33x36xf32, #tpu.memory_space<vmem>>, vector<33x36xf32>
    %89 = arith.mulf %47, %47 : vector<36x128xf32>
    %cst_22 = arith.constant dense<0.000000e+00> : vector<33x128xf32>
    %90 = tpu.matmul %88, %89, %cst_22 {dimension_numbers = #tpu.dot_dimension_numbers<[1], [0], [0], [1], [0, 0, 1, 1], [], []>} : vector<33x36xf32>, vector<36x128xf32>, vector<33x128xf32> -> vector<33x128xf32>
    %91 = vector.extract_strided_slice %47 {offsets = [0, 0], sizes = [33, 128], strides = [1, 1]} : vector<36x128xf32> to vector<33x128xf32>
    %92 = vector.broadcast %77 : vector<1x128xf32> to vector<33x128xf32>
    %93 = arith.mulf %91, %92 : vector<33x128xf32>
    %94 = vector.extract_strided_slice %47 {offsets = [1, 0], sizes = [33, 128], strides = [1, 1]} : vector<36x128xf32> to vector<33x128xf32>
    %95 = vector.broadcast %78 : vector<1x128xf32> to vector<33x128xf32>
    %96 = arith.mulf %94, %95 : vector<33x128xf32>
    %97 = arith.addf %93, %96 : vector<33x128xf32>
    %98 = vector.extract_strided_slice %47 {offsets = [2, 0], sizes = [33, 128], strides = [1, 1]} : vector<36x128xf32> to vector<33x128xf32>
    %99 = vector.broadcast %79 : vector<1x128xf32> to vector<33x128xf32>
    %100 = arith.mulf %98, %99 : vector<33x128xf32>
    %101 = arith.addf %97, %100 : vector<33x128xf32>
    %102 = vector.extract_strided_slice %47 {offsets = [3, 0], sizes = [33, 128], strides = [1, 1]} : vector<36x128xf32> to vector<33x128xf32>
    %103 = vector.broadcast %80 : vector<1x128xf32> to vector<33x128xf32>
    %104 = arith.mulf %102, %103 : vector<33x128xf32>
    %105 = arith.addf %101, %104 : vector<33x128xf32>
    %106 = math.sqrt %90 : vector<33x128xf32>
    %cst_23 = arith.constant 9.99999993E-9 : f32
    %107 = vector.broadcast %cst_23 : f32 to vector<33x128xf32>
    %108 = arith.addf %106, %107 : vector<33x128xf32>
    %109 = math.sqrt %87 : vector<1x128xf32>
    %cst_24 = arith.constant 9.99999993E-9 : f32
    %110 = vector.broadcast %cst_24 : f32 to vector<1x128xf32>
    %111 = arith.addf %109, %110 : vector<1x128xf32>
    %112 = vector.broadcast %111 : vector<1x128xf32> to vector<33x128xf32>
    %113 = arith.mulf %108, %112 : vector<33x128xf32>
    %114 = arith.divf %105, %113 : vector<33x128xf32>
    %c0_25 = arith.constant 0 : index
    %c0_26 = arith.constant 0 : index
    %c0_27 = arith.constant 0 : index
    %c0_28 = arith.constant 0 : index
    %115 = vector.load %arg10[%c0_25, %c0_26, %c0_27, %c0_28] : memref<1x1x33x128xf32, #tpu.memory_space<vmem>>, vector<1x1x33x128xf32>
    %116 = vector.shape_cast %115 : vector<1x1x33x128xf32> to vector<33x128xf32>
    %117 = vector.shape_cast %114 : vector<33x128xf32> to vector<1x1x33x128xf32>
    tpu.vector_store %arg10[%c0_25, %c0_26, %c0_27, %c0_28], %117 {strides = array<i32>} : memref<1x1x33x128xf32, #tpu.memory_space<vmem>>, vector<1x1x33x128xf32>,
    return
  }
  func.func @transform_0(%arg0: i32, %arg1: i32, %arg2: i32) -> (i32, i32, i32, i32) {
    %c0_i32 = arith.constant 0 : i32
    %c0_i32_0 = arith.constant 0 : i32
    %c0_i32_1 = arith.constant 0 : i32
    return %arg0, %arg1, %c0_i32, %c0_i32_0 : i32, i32, i32, i32
  }
  func.func @transform_1(%arg0: i32, %arg1: i32, %arg2: i32) -> (i32, i32, i32, i32) {
    %c0_i32 = arith.constant 0 : i32
    %c0_i32_0 = arith.constant 0 : i32
    %c0_i32_1 = arith.constant 0 : i32
    %c0_i32_2 = arith.constant 0 : i32
    return %arg0, %c0_i32, %c0_i32_0, %c0_i32_1 : i32, i32, i32, i32
  }
  func.func @transform_2(%arg0: i32, %arg1: i32, %arg2: i32) -> (i32, i32) {
    %c0_i32 = arith.constant 0 : i32
    %c0_i32_0 = arith.constant 0 : i32
    %c0_i32_1 = arith.constant 0 : i32
    return %c0_i32, %c0_i32_0 : i32, i32
  }
  func.func @transform_3(%arg0: i32, %arg1: i32, %arg2: i32) -> (i32, i32) {
    %c0_i32 = arith.constant 0 : i32
    %c0_i32_0 = arith.constant 0 : i32
    %c0_i32_1 = arith.constant 0 : i32
    return %c0_i32, %c0_i32_0 : i32, i32
  }
  func.func @transform_4(%arg0: i32, %arg1: i32, %arg2: i32) -> (i32, i32) {
    %c0_i32 = arith.constant 0 : i32
    %c0_i32_0 = arith.constant 0 : i32
    %c0_i32_1 = arith.constant 0 : i32
    return %c0_i32, %c0_i32_0 : i32, i32
  }
  func.func @transform_5(%arg0: i32, %arg1: i32, %arg2: i32) -> (i32, i32) {
    %c0_i32 = arith.constant 0 : i32
    %c0_i32_0 = arith.constant 0 : i32
    %c0_i32_1 = arith.constant 0 : i32
    return %c0_i32, %c0_i32_0 : i32, i32
  }
  func.func @transform_6(%arg0: i32, %arg1: i32, %arg2: i32) -> (i32, i32, i32, i32) {
    %c0_i32 = arith.constant 0 : i32
    %c0_i32_0 = arith.constant 0 : i32
    return %arg0, %arg1, %c0_i32, %arg2 : i32, i32, i32, i32
  }
  func.func @transform_7(%arg0: i32, %arg1: i32, %arg2: i32) -> (i32, i32, i32, i32) {
    %c0_i32 = arith.constant 0 : i32
    %c0_i32_0 = arith.constant 0 : i32
    return %arg0, %arg1, %c0_i32, %arg2 : i32, i32, i32, i32
  }
}

</mosaic_0001>

<llo_original>
// kernel: tpu_custom_call.1
$region0: #{tpu_custom_call.1}
  #allocation0 [shape = 'u32[]', space=smem, size = 0x4, offset = 0x4, fixed_abs, tag = 'smem constant byte address 0x4 - core index']
  #allocation1 [shape = 'u32[144,128]{1,0:T(1,128)}', space=vmem, size = 0x12000, scoped, tag = 'internal scratch']
  %s0 = inlined_call_operand.hbm [shape: f32[2,4,2,256], index: 0, kind: input, shape index: {}]
  %s1 = inlined_call_operand.hbm [shape: f32[2,4,2,256], index: 1, kind: input, shape index: {}]
  %s2 = inlined_call_operand.hbm [shape: f32[16,36], index: 2, kind: input, shape index: {}]
  %s3 = inlined_call_operand.vmem [shape: f32[33,36], index: 3, kind: input, shape index: {}]
  %s4 = inlined_call_operand.vmem [shape: f32[16,1], index: 4, kind: input, shape index: {}]
  %s5 = inlined_call_operand.vmem [shape: f32[16,1], index: 5, kind: input, shape index: {}]
  %s6 = inlined_call_operand.hbm [shape: f32[2,4,16,128], index: 6, kind: output, shape index: {0}]
  %s7 = inlined_call_operand.vmem [shape: f32[2,4,33,128], index: 7, kind: output, shape index: {1}]
  %8 = xla_tuple %s6, %s7
  %s9 = sld [smem:[#allocation0]]
  $region77: #{tpu_custom_call.1} parent=0
    _
  %s11 = ssub.s32 1, %s9
  %s12 = scalar_select 0, %s11, %s9
  $region1: #{tpu_custom_call.1} parent=0
    #allocation2 [shape = 'u8[4096]{0}', space=vmem, size = 0x1000, scoped, tag = 'input window, operand 0']
    #allocation3 [shape = 's32[2]{0}', space=sflag, size = 0x8, scoped, tag = 'scoped memory for tpu_custom_call.1']
    #allocation4 [shape = 's32[2]{0}', space=sflag, size = 0x8, scoped, tag = 'scoped memory for tpu_custom_call.1']
    #allocation5 [shape = 'u8[4096]{0}', space=vmem, size = 0x1000, scoped, tag = 'input window, operand 1']
    #allocation6 [shape = 's32[2]{0}', space=sflag, size = 0x8, scoped, tag = 'scoped memory for tpu_custom_call.1']
    #allocation7 [shape = 'u8[8192]{0}', space=vmem, size = 0x2000, scoped, tag = 'input window, operand 2, single buffered']
    #allocation8 [shape = 'u8[16384]{0}', space=vmem, size = 0x4000, scoped, tag = 'output window, operand 0']
    %13 = vsyncpa [#allocation3], 0
    %s14 = scalar_lea.sflag [#allocation3], 1
    %15 = vsyncpa %s14, 0
    %16 = vsyncpa [#allocation6], 0
    %s17 = scalar_lea.sflag [#allocation6], 1
    %18 = vsyncpa %s17, 0
    %19 = vsyncpa [#allocation4], 0
    %s20 = scalar_lea.sflag [#allocation4], 1
    %21 = vsyncpa %s20, 0
    loop: start=0, step=1, limit=10
    $region2: #{tpu_custom_call.1} parent=1 // loop_pre_header
      _
    $region3: #{tpu_custom_call.1} parent=1 // loop_header
      %s23 = sphi 0, %s27
      %p24 = scmp.ge.s32.totalorder %s23, 10
      %s30 = sphi 0, %s49
      %s31 = sphi 0, %s45
      %s32 = sphi 0, %s41
      %s33 = sphi 0, %s30
      %s34 = sphi 0, %s31
      %s35 = sphi 0, %s32
      %s36 = sphi 0, %s33
      %s37 = sphi 0, %s34
      %s38 = sphi 0, %s35
      %s54 = sphi 0, %s56
      %s57 = sphi 0, %s54
      %s58 = sphi 0, %s57
      %s74 = sphi 0, %s58
      %s80 = sphi 0, %s82
      %s83 = sphi 0, %s80
      %s84 = sphi 0, %s83
      %s100 = sphi 0, %s84
      %s104 = sphi 0, %s104
      %s106 = sphi 0, %s104
      %s107 = sphi 0, %s106
      %s121 = sphi 0, %s107
      %s125 = sphi 0, %s125
      %s127 = sphi 0, %s125
      %s128 = sphi 0, %s127
      %s142 = sphi 0, %s128
      %s146 = sphi 0, %s146
      %s148 = sphi 0, %s146
      %s149 = sphi 0, %s148
      %s163 = sphi 0, %s149
      %s167 = sphi 0, %s167
      %s169 = sphi 0, %s167
      %s170 = sphi 0, %s169
      %s184 = sphi 0, %s170
      %s194 = sphi 0, %s196
      %s197 = sphi 0, %s194
      %s198 = sphi 0, %s197
      %s214 = sphi 0, %s198
      %s224 = sphi 0, %s226
      %s227 = sphi 0, %s224
      %s228 = sphi 0, %s227
      %s244 = sphi 0, %s228
    $region4: #{tpu_custom_call.1} parent=1 // loop_header_branch
      %26 = sbr.rel (%p24) target = $region8
    $region5: #{tpu_custom_call.1} parent=1 // loop_body
      %s28 = ssub.s32 %s23, 1
      %s29 = ssub.s32 %s23, 2
      %s39 = sadd.s32 1, %s32
      %p40 = scmp.ge.s32.totalorder %s39, 1
      %s41 = scalar_select %p40, 0, %s39
      %s42 = sadd.s32 1, %s31
      %s43 = scalar_select %p40, %s42, %s31
      %p44 = scmp.ge.s32.totalorder %s43, 4
      %s45 = scalar_select %p44, 0, %s43
      %s46 = sadd.s32 1, %s30
      %s47 = scalar_select %p44, %s46, %s30
      %p48 = scmp.ge.s32.totalorder %s47, 2
      %s49 = scalar_select %p48, 0, %s47
      %s50 = ssub.s32 %s30, %s49
      %s51 = ssub.s32 %s31, %s45
      %s52 = sor.u32 %s50, %s51
      %p53 = scmp.eq.s32.totalorder %s52, 0
      %s55 = sadd.s32 %s54, 1
      %s56 = scalar_select %p53, %s54, %s55
      %p59 = pneg %p53
      %p60 = scmp.eq.s32.totalorder %s23, 7
      %p61 = por %p59, %p60
      %p62 = scmp.ne.s32.totalorder %s54, %s57
      %p63 = scmp.eq.s32.totalorder %s23, 0
      %p64 = por %p62, %p63
      %p65 = scmp.ne.s32.totalorder %s54, %s57
      %p66 = scmp.eq.s32.totalorder %s28, 7
      %p67 = por %p65, %p66
      %p68 = scmp.ne.s32.totalorder %s57, %s58
      %p69 = scmp.eq.s32.totalorder %s28, 0
      %p70 = por %p68, %p69
      %p71 = scmp.ne.s32.totalorder %s57, %s58
      %p72 = scmp.eq.s32.totalorder %s29, 7
      %p73 = por %p71, %p72
      %p75 = scmp.ne.s32.totalorder %s58, %s74
      %p76 = scmp.eq.s32.totalorder %s29, 0
      %p77 = por %p75, %p76
      %s78 = ssub.s32 %s30, %s49
      %p79 = scmp.eq.s32.totalorder %s78, 0
      %s81 = sadd.s32 %s80, 1
      %s82 = scalar_select %p79, %s80, %s81
      %p85 = pneg %p79
      %p86 = scmp.eq.s32.totalorder %s23, 7
      %p87 = por %p85, %p86
      %p88 = scmp.ne.s32.totalorder %s80, %s83
      %p89 = scmp.eq.s32.totalorder %s23, 0
      %p90 = por %p88, %p89
      %p91 = scmp.ne.s32.totalorder %s80, %s83
      %p92 = scmp.eq.s32.totalorder %s28, 7
      %p93 = por %p91, %p92
      %p94 = scmp.ne.s32.totalorder %s83, %s84
      %p95 = scmp.eq.s32.totalorder %s28, 0
      %p96 = por %p94, %p95
      %p97 = scmp.ne.s32.totalorder %s83, %s84
      %p98 = scmp.eq.s32.totalorder %s29, 7
      %p99 = por %p97, %p98
      %p101 = scmp.ne.s32.totalorder %s84, %s100
      %p102 = scmp.eq.s32.totalorder %s29, 0
      %p103 = por %p101, %p102
      %s105 = sadd.s32 %s104, 1
      %p108 = scmp.eq.s32.totalorder %s23, 7
      %p109 = scmp.ne.s32.totalorder %s104, %s106
      %p110 = scmp.eq.s32.totalorder %s23, 0
      %p111 = por %p109, %p110
      %p112 = scmp.ne.s32.totalorder %s104, %s106
      %p113 = scmp.eq.s32.totalorder %s28, 7
      %p114 = por %p112, %p113
      %p115 = scmp.ne.s32.totalorder %s106, %s107
      %p116 = scmp.eq.s32.totalorder %s28, 0
      %p117 = por %p115, %p116
      %p118 = scmp.ne.s32.totalorder %s106, %s107
      %p119 = scmp.eq.s32.totalorder %s29, 7
      %p120 = por %p118, %p119
      %p122 = scmp.ne.s32.totalorder %s107, %s121
      %p123 = scmp.eq.s32.totalorder %s29, 0
      %p124 = por %p122, %p123
      %s126 = sadd.s32 %s125, 1
      %p129 = scmp.eq.s32.totalorder %s23, 7
      %p130 = scmp.ne.s32.totalorder %s125, %s127
      %p131 = scmp.eq.s32.totalorder %s23, 0
      %p132 = por %p130, %p131
      %p133 = scmp.ne.s32.totalorder %s125, %s127
      %p134 = scmp.eq.s32.totalorder %s28, 7
      %p135 = por %p133, %p134
      %p136 = scmp.ne.s32.totalorder %s127, %s128
      %p137 = scmp.eq.s32.totalorder %s28, 0
      %p138 = por %p136, %p137
      %p139 = scmp.ne.s32.totalorder %s127, %s128
      %p140 = scmp.eq.s32.totalorder %s29, 7
      %p141 = por %p139, %p140
      %p143 = scmp.ne.s32.totalorder %s128, %s142
      %p144 = scmp.eq.s32.totalorder %s29, 0
      %p145 = por %p143, %p144
      %s147 = sadd.s32 %s146, 1
      %p150 = scmp.eq.s32.totalorder %s23, 7
      %p151 = scmp.ne.s32.totalorder %s146, %s148
      %p152 = scmp.eq.s32.totalorder %s23, 0
      %p153 = por %p151, %p152
      %p154 = scmp.ne.s32.totalorder %s146, %s148
      %p155 = scmp.eq.s32.totalorder %s28, 7
      %p156 = por %p154, %p155
      %p157 = scmp.ne.s32.totalorder %s148, %s149
      %p158 = scmp.eq.s32.totalorder %s28, 0
      %p159 = por %p157, %p158
      %p160 = scmp.ne.s32.totalorder %s148, %s149
      %p161 = scmp.eq.s32.totalorder %s29, 7
      %p162 = por %p160, %p161
      %p164 = scmp.ne.s32.totalorder %s149, %s163
      %p165 = scmp.eq.s32.totalorder %s29, 0
      %p166 = por %p164, %p165
      %s168 = sadd.s32 %s167, 1
      %p171 = scmp.eq.s32.totalorder %s23, 7
      %p172 = scmp.ne.s32.totalorder %s167, %s169
      %p173 = scmp.eq.s32.totalorder %s23, 0
      %p174 = por %p172, %p173
      %p175 = scmp.ne.s32.totalorder %s167, %s169
      %p176 = scmp.eq.s32.totalorder %s28, 7
      %p177 = por %p175, %p176
      %p178 = scmp.ne.s32.totalorder %s169, %s170
      %p179 = scmp.eq.s32.totalorder %s28, 0
      %p180 = por %p178, %p179
      %p181 = scmp.ne.s32.totalorder %s169, %s170
      %p182 = scmp.eq.s32.totalorder %s29, 7
      %p183 = por %p181, %p182
      %p185 = scmp.ne.s32.totalorder %s170, %s184
      %p186 = scmp.eq.s32.totalorder %s29, 0
      %p187 = por %p185, %p186
      %s188 = ssub.s32 %s30, %s49
      %s189 = ssub.s32 %s31, %s45
      %s190 = sor.u32 %s188, %s189
      %s191 = ssub.s32 %s32, %s41
      %s192 = sor.u32 %s190, %s191
      %p193 = scmp.eq.s32.totalorder %s192, 0
      %s195 = sadd.s32 %s194, 1
      %s196 = scalar_select %p193, %s194, %s195
      %p199 = pneg %p193
      %p200 = scmp.eq.s32.totalorder %s23, 7
      %p201 = por %p199, %p200
      %p202 = scmp.ne.s32.totalorder %s194, %s197
      %p203 = scmp.eq.s32.totalorder %s23, 0
      %p204 = por %p202, %p203
      %p205 = scmp.ne.s32.totalorder %s194, %s197
      %p206 = scmp.eq.s32.totalorder %s28, 7
      %p207 = por %p205, %p206
      %p208 = scmp.ne.s32.totalorder %s197, %s198
      %p209 = scmp.eq.s32.totalorder %s28, 0
      %p210 = por %p208, %p209
      %p211 = scmp.ne.s32.totalorder %s197, %s198
      %p212 = scmp.eq.s32.totalorder %s29, 7
      %p213 = por %p211, %p212
      %p215 = scmp.ne.s32.totalorder %s198, %s214
      %p216 = scmp.eq.s32.totalorder %s29, 0
      %p217 = por %p215, %p216
      %s218 = ssub.s32 %s30, %s49
      %s219 = ssub.s32 %s31, %s45
      %s220 = sor.u32 %s218, %s219
      %s221 = ssub.s32 %s32, %s41
      %s222 = sor.u32 %s220, %s221
      %p223 = scmp.eq.s32.totalorder %s222, 0
      %s225 = sadd.s32 %s224, 1
      %s226 = scalar_select %p223, %s224, %s225
      %p229 = pneg %p223
      %p230 = scmp.eq.s32.totalorder %s23, 7
      %p231 = por %p229, %p230
      %p232 = scmp.ne.s32.totalorder %s224, %s227
      %p233 = scmp.eq.s32.totalorder %s23, 0
      %p234 = por %p232, %p233
      %p235 = scmp.ne.s32.totalorder %s224, %s227
      %p236 = scmp.eq.s32.totalorder %s28, 7
      %p237 = por %p235, %p236
      %p238 = scmp.ne.s32.totalorder %s227, %s228
      %p239 = scmp.eq.s32.totalorder %s28, 0
      %p240 = por %p238, %p239
      %p241 = scmp.ne.s32.totalorder %s227, %s228
      %p242 = scmp.eq.s32.totalorder %s29, 7
      %p243 = por %p241, %p242
      %p245 = scmp.ne.s32.totalorder %s228, %s244
      %p246 = scmp.eq.s32.totalorder %s29, 0
      %p247 = por %p245, %p246
      %p248 = scmp.le.s32.totalorder 1, %s23
      %p249 = scmp.lt.s32.totalorder %s23, 9
      %p250 = pnand %p248, %p249
      %p251 = pneg %p250
      // Predicated region
      $region9: #{tpu_custom_call.1} parent=5 // pred_check
        _
      $region10: #{tpu_custom_call.1} parent=5 // pred_check_branch
        %253 = sbr.rel (%p250) target = $region12
      $region11: #{tpu_custom_call.1} parent=5 // pred_region
        %s254 = ssub.s32 %s23, 1
        // Predicated region
        $region13: #{tpu_custom_call.1} parent=11 // pred_check
          %p255 = pneg %p117
        $region14: #{tpu_custom_call.1} parent=11 // pred_check_branch
          %257 = sbr.rel (%p255) target = $region16
        $region15: #{tpu_custom_call.1} parent=11 // pred_region
          %s259 = ssub.s32 256, 256
          %260 = vsyncadd [#allocation6], %s259
          %s261 = sshll.u32 [#allocation7], 4
          %s262 = int_to_ptr.vmem [resolvable:$true] %s261
          %267 = dma.hbm_to_vmem [thread:$0]  %s2, 256, %s262, [#allocation6], 128, 128, 8
        $region16: #{tpu_custom_call.1} parent=11 // pred_fallthru
          _
        // Predicated region
        $region17: #{tpu_custom_call.1} parent=11 // pred_check
          %p268 = pneg %p138
        $region18: #{tpu_custom_call.1} parent=11 // pred_check_branch
          %270 = sbr.rel (%p268) target = $region20
        $region19: #{tpu_custom_call.1} parent=11 // pred_region
          _
        $region20: #{tpu_custom_call.1} parent=11 // pred_fallthru
          _
        // Predicated region
        $region21: #{tpu_custom_call.1} parent=11 // pred_check
          %p271 = pneg %p159
        $region22: #{tpu_custom_call.1} parent=11 // pred_check_branch
          %273 = sbr.rel (%p271) target = $region24
        $region23: #{tpu_custom_call.1} parent=11 // pred_region
          _
        $region24: #{tpu_custom_call.1} parent=11 // pred_fallthru
          _
        // Predicated region
        $region25: #{tpu_custom_call.1} parent=11 // pred_check
          %p274 = pneg %p180
        $region26: #{tpu_custom_call.1} parent=11 // pred_check_branch
          %276 = sbr.rel (%p274) target = $region28
        $region27: #{tpu_custom_call.1} parent=11 // pred_region
          _
        $region28: #{tpu_custom_call.1} parent=11 // pred_fallthru
          _
      $region12: #{tpu_custom_call.1} parent=5 // pred_fallthru
        _
      %p277 = scmp.lt.s32.totalorder %s23, 8
      // Predicated region
      $region29: #{tpu_custom_call.1} parent=5 // pred_check
        %p278 = pneg %p277
      $region30: #{tpu_custom_call.1} parent=5 // pred_check_branch
        %280 = sbr.rel (%p278) target = $region32
      $region31: #{tpu_custom_call.1} parent=5 // pred_region
        // Predicated region
        $region33: #{tpu_custom_call.1} parent=31 // pred_check
          %p281 = pneg %p64
        $region34: #{tpu_custom_call.1} parent=31 // pred_check_branch
          %283 = sbr.rel (%p281) target = $region36
        $region35: #{tpu_custom_call.1} parent=31 // pred_region
          %s284 = sand.u32 %s54, 1
          %s285 = scalar_lea.sflag [#allocation3], %s284
          %s286 = sand.u32 %s54, 1
          %s287 = smul.addr %s286, 4
          %s288 = scalar_lea.vmem [#allocation2], %s287
          %s290 = ssub.s32 64, 64
          %291 = vsyncadd %s285, %s290
          %s292 = smul.addr %s31, 2
          %s293 = smul.addr %s30, 8
          %s294 = sadd.s32 %s292, %s293
          %s295 = smul.addr %s294, 32
          %s296 = scalar_lea.hbm %s0, %s295
          %s298 = sshll.u32 %s288, 4
          %s299 = int_to_ptr.vmem [resolvable:$true] %s298
          %301 = dma.hbm_to_vmem [thread:$0]  %s296, 64, %s299, %s285
        $region36: #{tpu_custom_call.1} parent=31 // pred_fallthru
          _
        // Predicated region
        $region37: #{tpu_custom_call.1} parent=31 // pred_check
          %p302 = pneg %p90
        $region38: #{tpu_custom_call.1} parent=31 // pred_check_branch
          %304 = sbr.rel (%p302) target = $region40
        $region39: #{tpu_custom_call.1} parent=31 // pred_region
          %s305 = sand.u32 %s23, 1
          %s306 = scalar_lea.sflag [#allocation6], %s305
          %s307 = sand.u32 %s80, 1
          %s308 = smul.addr %s307, 4
          %s309 = scalar_lea.vmem [#allocation5], %s308
          %s311 = ssub.s32 64, 64
          %312 = vsyncadd %s306, %s311
          %s313 = smul.addr %s30, 8
          %s314 = smul.addr %s313, 32
          %s315 = scalar_lea.hbm %s1, %s314
          %s317 = sshll.u32 %s309, 4
          %s318 = int_to_ptr.vmem [resolvable:$true] %s317
          %320 = dma.hbm_to_vmem [thread:$0]  %s315, 64, %s318, %s306
        $region40: #{tpu_custom_call.1} parent=31 // pred_fallthru
          _
      $region32: #{tpu_custom_call.1} parent=5 // pred_fallthru
        _
      %p321 = scmp.le.s32.totalorder 1, %s23
      %p322 = scmp.lt.s32.totalorder %s23, 9
      %p323 = pnand %p321, %p322
      %p324 = pneg %p323
      // Predicated region
      $region41: #{tpu_custom_call.1} parent=5 // pred_check
        _
      $region42: #{tpu_custom_call.1} parent=5 // pred_check_branch
        %326 = sbr.rel (%p323) target = $region44
      $region43: #{tpu_custom_call.1} parent=5 // pred_region
        %s327 = ssub.s32 %s23, 1
        %s328 = sand.u32 %s57, 1
        %s329 = scalar_lea.sflag [#allocation3], %s328
        %s330 = sand.u32 %s57, 1
        %s331 = smul.addr %s330, 4
        %s332 = scalar_lea.vmem [#allocation2], %s331
        // Predicated region
        $region45: #{tpu_custom_call.1} parent=43 // pred_check
          %p333 = pneg %p70
        $region46: #{tpu_custom_call.1} parent=43 // pred_check_branch
          %335 = sbr.rel (%p333) target = $region48
        $region47: #{tpu_custom_call.1} parent=43 // pred_region
          %336 = dma.done %s329, 64
        $region48: #{tpu_custom_call.1} parent=43 // pred_fallthru
          _
        %s337 = sand.u32 %s28, 1
        %s338 = scalar_lea.sflag [#allocation6], %s337
        %s339 = sand.u32 %s83, 1
        %s340 = smul.addr %s339, 4
        %s341 = scalar_lea.vmem [#allocation5], %s340
        // Predicated region
        $region49: #{tpu_custom_call.1} parent=43 // pred_check
          %p342 = pneg %p96
        $region50: #{tpu_custom_call.1} parent=43 // pred_check_branch
          %344 = sbr.rel (%p342) target = $region52
        $region51: #{tpu_custom_call.1} parent=43 // pred_region
          %345 = dma.done %s338, 64
        $region52: #{tpu_custom_call.1} parent=43 // pred_fallthru
          _
        // Predicated region
        $region53: #{tpu_custom_call.1} parent=43 // pred_check
          %p346 = pneg %p117
        $region54: #{tpu_custom_call.1} parent=43 // pred_check_branch
          %348 = sbr.rel (%p346) target = $region56
        $region55: #{tpu_custom_call.1} parent=43 // pred_region
          %349 = dma.done [#allocation6], 256
        $region56: #{tpu_custom_call.1} parent=43 // pred_fallthru
          _
        %s350 = sand.u32 %s57, 1
        %s351 = scalar_lea.sflag [#allocation3], %s350
        %s352 = sand.u32 %s57, 1
        %s353 = smul.addr %s352, 4
        %s354 = scalar_lea.vmem [#allocation2], %s353
        %p355 = pneg %p70
        %p356 = pneg %p67
        %s357 = sand.u32 %s28, 1
        %s358 = scalar_lea.sflag [#allocation6], %s357
        %s359 = sand.u32 %s83, 1
        %s360 = smul.addr %s359, 4
        %s361 = scalar_lea.vmem [#allocation5], %s360
        %p362 = pneg %p96
        %p363 = pneg %p93
        %p364 = pneg %p117
        %p365 = pneg %p114
        %p366 = pneg %p138
        %p367 = pneg %p135
        %p368 = pneg %p159
        %p369 = pneg %p156
        %p370 = pneg %p180
        %p371 = pneg %p177
        %p372 = pneg %p210
        %p373 = pneg %p207
        %s374 = sand.u32 %s197, 1
        %s375 = scalar_lea.sflag [#allocation4], %s374
        %s376 = sand.u32 %s197, 1
        %s377 = smul.addr %s376, 16
        %s378 = scalar_lea.vmem [#allocation8], %s377
        %p379 = pneg %p240
        %p380 = pneg %p237
        %p381 = scmp.lt.s32.totalorder %s33, 1
        %s382 = scalar_select %p381, %s33, 1
        %p383 = scmp.lt.s32.totalorder %s34, 3
        %s384 = scalar_select %p383, %s34, 3
        %p385 = scmp.lt.s32.totalorder %s35, 0
        %s386 = scalar_select %p385, %s35, 0
        %s387 = smul.addr %s384, 5
        %s388 = sadd.s32 %s386, %s387
        %s389 = smul.addr %s382, 20
        %s390 = sadd.s32 %s388, %s389
        %s391 = smul.addr %s390, 8
        %s392 = scalar_lea.vmem %s7, %s391
        %p393 = scmp.lt.s32.totalorder %s33, 1
        %s394 = scalar_select %p393, %s33, 1
        %p395 = scmp.lt.s32.totalorder %s34, 3
        %s396 = scalar_select %p395, %s34, 3
        %p397 = scmp.lt.s32.totalorder %s35, 0
        %s398 = scalar_select %p397, %s35, 0
        %s399 = smul.addr %s396, 5
        %s400 = sadd.s32 %s398, %s399
        %s401 = smul.addr %s394, 20
        %s402 = sadd.s32 %s400, %s401
        %s403 = smul.addr %s402, 8
        %s404 = scalar_lea.vmem %s7, %s403
        %s405 = smul.u32 %s35, 128
        %s406 = sshra.s32 %s405, 7
        %s407 = sand.u32 %s405, 127
        %s408 = smul.addr %s406, 2
        %s409 = scalar_lea.vmem %s332, %s408 [#allocation2]
        %v410 = vld [vmem:[%s409] sm:$0xf]
        %s411 = smul.addr %s406, 2
        %s412 = scalar_lea.vmem %s341, %s411 [#allocation5]
        %v413 = vld [vmem:[%s412] sm:$0xf]
        %v415 = vlaneseq
        %v416 = vshrl.u32 %v415, 7
        %v417 = vsub.s32 0, %v416
        %v418 = vrot.slane %v410, %v417
        %v419 = vlaneseq
        %v420 = vshrl.u32 %v419, 7
        %v421 = vsub.s32 2, %v420
        %v422 = vrot.slane %v410, %v421
        %423 = vrot.lane.b32.xlu0 %v418, 127
        %v424 = vpop.permute.xlu0 %423
        %425 = vrot.lane.b32.xlu0 %v422, 127
        %v426 = vpop.permute.xlu0 %425
        %vm427 = vcmask 1039360
        %v428 = vsel %vm427, %v424, %v426
        %v430 = vlaneseq
        %v431 = vshrl.u32 %v430, 7
        %v432 = vsub.s32 1, %v431
        %v433 = vrot.slane %v410, %v432
        %v434 = vlaneseq
        %v435 = vshrl.u32 %v434, 7
        %v436 = vsub.s32 3, %v435
        %v437 = vrot.slane %v410, %v436
        %438 = vrot.lane.b32.xlu0 %v433, 127
        %v439 = vpop.permute.xlu0 %438
        %440 = vrot.lane.b32.xlu0 %v437, 127
        %v441 = vpop.permute.xlu0 %440
        %v442 = vsel %vm427, %v439, %v441
        %444 = vrot.lane.b32.xlu0 %v418, 126
        %v445 = vpop.permute.xlu0 %444
        %446 = vrot.lane.b32.xlu0 %v422, 126
        %v447 = vpop.permute.xlu0 %446
        %vm448 = vcmask 1031168
        %v449 = vsel %vm448, %v445, %v447
        %451 = vrot.lane.b32.xlu0 %v433, 126
        %v452 = vpop.permute.xlu0 %451
        %453 = vrot.lane.b32.xlu0 %v437, 126
        %v454 = vpop.permute.xlu0 %453
        %v455 = vsel %vm448, %v452, %v454
        %457 = vrot.lane.b32.xlu0 %v418, 125
        %v458 = vpop.permute.xlu0 %457
        %459 = vrot.lane.b32.xlu0 %v422, 125
        %v460 = vpop.permute.xlu0 %459
        %vm461 = vcmask 1022976
        %v462 = vsel %vm461, %v458, %v460
        %464 = vrot.lane.b32.xlu0 %v433, 125
        %v465 = vpop.permute.xlu0 %464
        %466 = vrot.lane.b32.xlu0 %v437, 125
        %v467 = vpop.permute.xlu0 %466
        %v468 = vsel %vm461, %v465, %v467
        %470 = vrot.lane.b32.xlu0 %v418, 124
        %v471 = vpop.permute.xlu0 %470
        %472 = vrot.lane.b32.xlu0 %v422, 124
        %v473 = vpop.permute.xlu0 %472
        %vm474 = vcmask 1014784
        %v475 = vsel %vm474, %v471, %v473
        %477 = vrot.lane.b32.xlu0 %v433, 124
        %v478 = vpop.permute.xlu0 %477
        %479 = vrot.lane.b32.xlu0 %v437, 124
        %v480 = vpop.permute.xlu0 %479
        %v481 = vsel %vm474, %v478, %v480
        %483 = vrot.lane.b32.xlu0 %v418, 123
        %v484 = vpop.permute.xlu0 %483
        %485 = vrot.lane.b32.xlu0 %v422, 123
        %v486 = vpop.permute.xlu0 %485
        %vm487 = vcmask 1006592
        %v488 = vsel %vm487, %v484, %v486
        %490 = vrot.lane.b32.xlu0 %v433, 123
        %v491 = vpop.permute.xlu0 %490
        %492 = vrot.lane.b32.xlu0 %v437, 123
        %v493 = vpop.permute.xlu0 %492
        %v494 = vsel %vm487, %v491, %v493
        %496 = vrot.lane.b32.xlu0 %v418, 122
        %v497 = vpop.permute.xlu0 %496
        %498 = vrot.lane.b32.xlu0 %v422, 122
        %v499 = vpop.permute.xlu0 %498
        %vm500 = vcmask 998400
        %v501 = vsel %vm500, %v497, %v499
        %503 = vrot.lane.b32.xlu0 %v433, 122
        %v504 = vpop.permute.xlu0 %503
        %505 = vrot.lane.b32.xlu0 %v437, 122
        %v506 = vpop.permute.xlu0 %505
        %v507 = vsel %vm500, %v504, %v506
        %509 = vrot.lane.b32.xlu0 %v418, 121
        %v510 = vpop.permute.xlu0 %509
        %511 = vrot.lane.b32.xlu0 %v422, 121
        %v512 = vpop.permute.xlu0 %511
        %vm513 = vcmask 990208
        %v514 = vsel %vm513, %v510, %v512
        %516 = vrot.lane.b32.xlu0 %v433, 121
        %v517 = vpop.permute.xlu0 %516
        %518 = vrot.lane.b32.xlu0 %v437, 121
        %v519 = vpop.permute.xlu0 %518
        %v520 = vsel %vm513, %v517, %v519
        %vm522 = vcmask 1041408
        %v523 = vsel %vm522, %v410, %v428
        %vm524 = vcmask 1042432
        %v525 = vsel %vm524, %v523, %v442
        %vm526 = vcmask 1043456
        %v527 = vsel %vm526, %v525, %v449
        %vm528 = vcmask 1044480
        %v529 = vsel %vm528, %v527, %v455
        %vm530 = vcmask 1045504
        %v531 = vsel %vm530, %v529, %v462
        %vm532 = vcmask 1046528
        %v533 = vsel %vm532, %v531, %v468
        %vm534 = vcmask 1040384
        %v535 = vsel %vm534, %v475, %v481
        %v536 = vsel %vm522, %v535, %v488
        %v537 = vsel %vm524, %v536, %v494
        %v538 = vsel %vm526, %v537, %v501
        %v539 = vsel %vm528, %v538, %v507
        %v540 = vsel %vm530, %v539, %v514
        %v541 = vsel %vm532, %v540, %v520
        %v560 = vsel %vm534, %v418, %v433
        %v561 = vsel %vm534, %v422, %v437
        %v562 = vsel %vm522, %v560, %v428
        %v563 = vsel %vm522, %v561, %v426
        %v564 = vsel %vm524, %v562, %v442
        %v565 = vsel %vm524, %v563, %v441
        %v566 = vsel %vm526, %v564, %v449
        %v567 = vsel %vm526, %v565, %v447
        %v568 = vsel %vm528, %v566, %v455
        %v569 = vsel %vm528, %v567, %v454
        %v570 = vsel %vm530, %v568, %v462
        %v571 = vsel %vm530, %v569, %v460
        %v572 = vsel %vm532, %v570, %v468
        %v573 = vsel %vm532, %v571, %v467
        %v574 = vsel %vm534, %v473, %v480
        %v575 = vsel %vm522, %v574, %v486
        %v576 = vsel %vm524, %v575, %v493
        %v577 = vsel %vm526, %v576, %v499
        %v578 = vsel %vm528, %v577, %v506
        %v579 = vsel %vm530, %v578, %v512
        %v580 = vsel %vm532, %v579, %v519
        %585 = vrot.lane.b32.xlu0 %v572, 120
        %v586 = vpop.permute.xlu0 %585
        %587 = vrot.lane.b32.xlu0 %v573, 120
        %v588 = vpop.permute.xlu0 %587
        %589 = vrot.lane.b32.xlu0 %v541, 120
        %v590 = vpop.permute.xlu0 %589
        %591 = vrot.lane.b32.xlu0 %v580, 120
        %v592 = vpop.permute.xlu0 %591
        %vm593 = vcmask 982016
        %v594 = vsel %vm593, %v586, %v588
        %v595 = vsel %vm593, %v590, %v592
        %600 = vrot.lane.b32.xlu0 %v564, 112
        %v601 = vpop.permute.xlu0 %600
        %602 = vrot.lane.b32.xlu0 %v565, 112
        %v603 = vpop.permute.xlu0 %602
        %vm604 = vcmask 916480
        %v605 = vsel %vm604, %v601, %v603
        %v607 = vld [vmem:[#allocation7] sm:$0xff]
        %v608 = vld [vmem:[#allocation7 + $0x8] sm:$0xff]
        %vm609 = vcmask 293888
        %v611 = vsel %vm609, %v607, 0
        %v614 = vsel %vm609, %v608, 0
        %v616 = vsel %vm526, %v605, 0
        %618 = vmatprep.subr.mxu0 0.0
        %619 = vmatpush1.msra.mxu0 %v533
        %620 = vmatprep.subr.mxu0 0.0
        %621 = vmatpush1.msra.mxu0 %v541
        %622 = vmatprep.subr.mxu0 0.0
        %623 = vmatpush1.msra.mxu0 %v594
        %624 = vmatprep.subr.mxu0 0.0
        %625 = vmatpush1.msra.mxu0 %v595
        %626 = vmatprep.subr.mxu0 0.0
        %627 = vmatpush1.msra.mxu0 %v616
        %628 = vmatprep.subr.mxu0 0.0
        %629 = vmatpush1.msra.mxu0 0.0
        %630 = vmatprep.subr.mxu0 0.0
        %631 = vmatpush1.msra.mxu0 0.0
        %632 = vmatprep.subr.mxu0 0.0
        %633 = vmatpush1.msra.mxu0 0.0
        %634 = vmatprep.subr.mxu0 0.0
        %635 = vmatpush1.msra.mxu0 0.0
        %636 = vmatprep.subr.mxu0 0.0
        %637 = vmatpush1.msra.mxu0 0.0
        %638 = vmatprep.subr.mxu0 0.0
        %639 = vmatpush1.msra.mxu0 0.0
        %640 = vmatprep.subr.mxu0 0.0
        %641 = vmatpush1.msra.mxu0 0.0
        %642 = vmatprep.subr.mxu0 0.0
        %643 = vmatpush1.msra.mxu0 0.0
        %644 = vmatprep.subr.mxu0 0.0
        %645 = vmatpush1.msra.mxu0 0.0
        %646 = vmatprep.subr.mxu0 0.0
        %647 = vmatpush1.msra.mxu0 0.0
        %648 = vmatprep.subr.mxu0 0.0
        %649 = vmatpush1.msra.mxu0 0.0
        %650 = vmatprep.subr.mxu0 0.0
        %651 = vmatpush1.msra.mxu0 0.0
        %652 = vmatprep.subr.mxu0 0.0
        %653 = vmatpush1.msra.mxu0 0.0
        %654 = vmatprep.subr.mxu0 0.0
        %655 = vmatpush1.msra.mxu0 0.0
        %656 = vmatprep.subr.mxu0 0.0
        %657 = vmatpush1.msra.mxu0 0.0
        %658 = vmatprep.subr.mxu0 0.0
        %659 = vmatpush1.msra.mxu0 0.0
        %660 = vmatprep.subr.mxu0 0.0
        %661 = vmatpush1.msra.mxu0 0.0
        %662 = vmatprep.subr.mxu0 0.0
        %663 = vmatpush1.msra.mxu0 0.0
        %664 = vmatprep.subr.mxu0 0.0
        %665 = vmatpush1.msra.mxu0 0.0
        %666 = vmatprep.subr.mxu0 0.0
        %667 = vmatpush1.msra.mxu0 0.0
        %668 = vmatprep.subr.mxu0 0.0
        %669 = vmatpush1.msra.mxu0 0.0
        %670 = vmatprep.subr.mxu0 0.0
        %671 = vmatpush1.msra.mxu0 0.0
        %672 = vmatprep.subr.mxu0 0.0
        %673 = vmatpush1.msra.mxu0 0.0
        %674 = vmatprep.subr.mxu0 0.0
        %675 = vmatpush1.msra.mxu0 0.0
        %676 = vmatprep.subr.mxu0 0.0
        %677 = vmatpush1.msra.mxu0 0.0
        %678 = vmatprep.subr.mxu0 0.0
        %679 = vmatpush1.msra.mxu0 0.0
        %680 = vmatprep.subr.mxu0 0.0
        %681 = vmatpush1.msra.mxu0 0.0
        %682 = vmatprep.mubr.f32.mxu0 0.0
        %683 = vmatmul.mubr.f32.gmra.mrb[0].mxu0 %v611
        %v684 = vpop.f32.mrb[0].mxu0
        %v685 = vadd.f32 0.0, %v684
        %v686 = vpop.f32.mrb[0].mxu0
        %687 = vmatprep.mubr.f32.mxu0 0.0
        %688 = vmatmul.mubr.f32.gmra.mrb[0].mxu0 %v614
        %v689 = vpop.f32.mrb[0].mxu0
        %v690 = vadd.f32 0.0, %v689
        %v691 = vpop.f32.mrb[0].mxu0
        %692 = vdwg.mxu0
        %v693 = vadd.f32 %v685, %v690
        %v694 = vrot.slane %v693, 4
        %v695 = vadd.f32 %v693, %v694
        %v696 = vrot.slane %v695, 2
        %v697 = vadd.f32 %v695, %v696
        %v698 = vrot.slane %v697, 1
        %v699 = vadd.f32 %v697, %v698
        %v700 = vrcp.pop 16.0
        %v701 = vmul.f32 %v699, %v700
        %v702 = vsub.f32 %v685, %v701
        %v703 = vsub.f32 %v690, %v701
        %v704 = vmul.f32 %v702, %v702
        %v705 = vmul.f32 %v703, %v703
        %v706 = vadd.f32 %v704, %v705
        %v707 = vrot.slane %v706, 4
        %v708 = vadd.f32 %v706, %v707
        %v709 = vrot.slane %v708, 2
        %v710 = vadd.f32 %v708, %v709
        %v711 = vrot.slane %v710, 1
        %v712 = vadd.f32 %v710, %v711
        %v713 = vmul.f32 %v712, %v700
        %v714 = vadd.f32 %v713, 1e-08
        %v715 = vrsqrt.pop %v714
        %v716 = vmul.f32 %v702, %v715
        %v717 = vmul.f32 %v703, %v715
        %v718 = vld [vmem:[%s4] sm:$0xff]
        %v719 = vld [vmem:[%s4 + $0x8] sm:$0xff]
        %721 = vset.pattern.permute.xlu0 0
        %722 = vperm.xlu0 %721, %v718
        %v723 = vpop.permute.xlu0 %722
        %726 = vset.pattern.permute.xlu0 0
        %727 = vperm.xlu0 %726, %v719
        %v728 = vpop.permute.xlu0 %727
        %v730 = vmul.f32 %v716, %v723
        %v731 = vmul.f32 %v717, %v728
        %v732 = vld [vmem:[%s5] sm:$0xff]
        %v733 = vld [vmem:[%s5 + $0x8] sm:$0xff]
        %735 = vset.pattern.permute.xlu0 0
        %736 = vperm.xlu0 %735, %v732
        %v737 = vpop.permute.xlu0 %736
        %740 = vset.pattern.permute.xlu0 0
        %741 = vperm.xlu0 %740, %v733
        %v742 = vpop.permute.xlu0 %741
        %v744 = vadd.f32 %v730, %v737
        %v745 = vadd.f32 %v731, %v742
        %746 = vst [vmem:[%s378] sm:$0xff] %v744
        %747 = vst [vmem:[%s378 + $0x8] sm:$0xff] %v745
        %v748 = vmul.f32 %v413, %v413
        %v750 = vrot.slane %v748, 7
        %v751 = vrot.slane %v750, 2
        %v753 = vadd.f32 %v748, %v751
        %754 = vrot.lane.b32.xlu0 %v748, 127
        %v755 = vpop.permute.xlu0 %754
        %v756 = vrot.slane %v755, 2
        %v757 = vsel %vm427, %v755, %v756
        %v759 = vadd.f32 %v753, %v757
        %760 = vrot.lane.b32.xlu0 %v751, 127
        %v761 = vpop.permute.xlu0 %760
        %v762 = vrot.slane %v761, 2
        %v763 = vsel %vm427, %v761, %v762
        %v765 = vadd.f32 %v759, %v763
        %v766 = vld [vmem:[%s3] sm:$0xff]
        %v767 = vld [vmem:[%s3 + $0x8] sm:$0xff]
        %v768 = vld [vmem:[%s3 + $0x10] sm:$0xff]
        %v769 = vld [vmem:[%s3 + $0x18] sm:$0xff]
        %v770 = vld [vmem:[%s3 + $0x20] sm:$0x1]
        %v771 = vmul.f32 %v533, %v533
        %v772 = vmul.f32 %v541, %v541
        %v773 = vmul.f32 %v594, %v594
        %v774 = vmul.f32 %v595, %v595
        %v775 = vmul.f32 %v605, %v605
        %v777 = vsel %vm609, %v766, 0
        %v780 = vsel %vm609, %v767, 0
        %v783 = vsel %vm609, %v768, 0
        %v786 = vsel %vm609, %v769, 0
        %v789 = vsel %vm609, %v770, 0
        %v792 = vsel %vm526, %v775, 0
        %794 = vmatprep.subr.mxu0 0.0
        %795 = vmatpush1.msra.mxu0 %v771
        %796 = vmatprep.subr.mxu0 0.0
        %797 = vmatpush1.msra.mxu0 %v772
        %798 = vmatprep.subr.mxu0 0.0
        %799 = vmatpush1.msra.mxu0 %v773
        %800 = vmatprep.subr.mxu0 0.0
        %801 = vmatpush1.msra.mxu0 %v774
        %802 = vmatprep.subr.mxu0 0.0
        %803 = vmatpush1.msra.mxu0 %v792
        %804 = vmatprep.subr.mxu0 0.0
        %805 = vmatpush1.msra.mxu0 0.0
        %806 = vmatprep.subr.mxu0 0.0
        %807 = vmatpush1.msra.mxu0 0.0
        %808 = vmatprep.subr.mxu0 0.0
        %809 = vmatpush1.msra.mxu0 0.0
        %810 = vmatprep.subr.mxu0 0.0
        %811 = vmatpush1.msra.mxu0 0.0
        %812 = vmatprep.subr.mxu0 0.0
        %813 = vmatpush1.msra.mxu0 0.0
        %814 = vmatprep.subr.mxu0 0.0
        %815 = vmatpush1.msra.mxu0 0.0
        %816 = vmatprep.subr.mxu0 0.0
        %817 = vmatpush1.msra.mxu0 0.0
        %818 = vmatprep.subr.mxu0 0.0
        %819 = vmatpush1.msra.mxu0 0.0
        %820 = vmatprep.subr.mxu0 0.0
        %821 = vmatpush1.msra.mxu0 0.0
        %822 = vmatprep.subr.mxu0 0.0
        %823 = vmatpush1.msra.mxu0 0.0
        %824 = vmatprep.subr.mxu0 0.0
        %825 = vmatpush1.msra.mxu0 0.0
        %826 = vmatprep.subr.mxu0 0.0
        %827 = vmatpush1.msra.mxu0 0.0
        %828 = vmatprep.subr.mxu0 0.0
        %829 = vmatpush1.msra.mxu0 0.0
        %830 = vmatprep.subr.mxu0 0.0
        %831 = vmatpush1.msra.mxu0 0.0
        %832 = vmatprep.subr.mxu0 0.0
        %833 = vmatpush1.msra.mxu0 0.0
        %834 = vmatprep.subr.mxu0 0.0
        %835 = vmatpush1.msra.mxu0 0.0
        %836 = vmatprep.subr.mxu0 0.0
        %837 = vmatpush1.msra.mxu0 0.0
        %838 = vmatprep.subr.mxu0 0.0
        %839 = vmatpush1.msra.mxu0 0.0
        %840 = vmatprep.subr.mxu0 0.0
        %841 = vmatpush1.msra.mxu0 0.0
        %842 = vmatprep.subr.mxu0 0.0
        %843 = vmatpush1.msra.mxu0 0.0
        %844 = vmatprep.subr.mxu0 0.0
        %845 = vmatpush1.msra.mxu0 0.0
        %846 = vmatprep.subr.mxu0 0.0
        %847 = vmatpush1.msra.mxu0 0.0
        %848 = vmatprep.subr.mxu0 0.0
        %849 = vmatpush1.msra.mxu0 0.0
        %850 = vmatprep.subr.mxu0 0.0
        %851 = vmatpush1.msra.mxu0 0.0
        %852 = vmatprep.subr.mxu0 0.0
        %853 = vmatpush1.msra.mxu0 0.0
        %854 = vmatprep.subr.mxu0 0.0
        %855 = vmatpush1.msra.mxu0 0.0
        %856 = vmatprep.subr.mxu0 0.0
        %857 = vmatpush1.msra.mxu0 0.0
        %858 = vmatprep.mubr.f32.mxu0 0.0
        %859 = vmatmul.mubr.f32.gmra.mrb[0].mxu0 %v777
        %v860 = vpop.f32.mrb[0].mxu0
        %v861 = vadd.f32 0.0, %v860
        %v862 = vpop.f32.mrb[0].mxu0
        %863 = vmatprep.mubr.f32.mxu0 0.0
        %864 = vmatmul.mubr.f32.gmra.mrb[0].mxu0 %v780
        %v865 = vpop.f32.mrb[0].mxu0
        %v866 = vadd.f32 0.0, %v865
        %v867 = vpop.f32.mrb[0].mxu0
        %868 = vmatprep.mubr.f32.mxu0 0.0
        %869 = vmatmul.mubr.f32.gmra.mrb[0].mxu0 %v783
        %v870 = vpop.f32.mrb[0].mxu0
        %v871 = vadd.f32 0.0, %v870
        %v872 = vpop.f32.mrb[0].mxu0
        %873 = vmatprep.mubr.f32.mxu0 0.0
        %874 = vmatmul.mubr.f32.gmra.mrb[0].mxu0 %v786
        %v875 = vpop.f32.mrb[0].mxu0
        %v876 = vadd.f32 0.0, %v875
        %v877 = vpop.f32.mrb[0].mxu0
        %878 = vmatprep.mubr.f32.mxu0 0.0
        %879 = vmatmul.mubr.f32.gmra.mrb[0].mxu0 %v789
        %v880 = vpop.f32.mrb[0].mxu0
        %v881 = vadd.f32 0.0, %v880
        %v882 = vpop.f32.mrb[0].mxu0
        %883 = vdwg.mxu0
        %v885 = vlaneseq
        %v886 = vshrl.u32 %v885, 7
        %v887 = vsub.s32 0, %v886
        %v888 = vrot.slane %v413, %v887
        %v889 = vlaneseq
        %v890 = vshrl.u32 %v889, 7
        %v891 = vsub.s32 2, %v890
        %v892 = vrot.slane %v413, %v891
        %v895 = vlaneseq
        %v896 = vshrl.u32 %v895, 7
        %v897 = vsub.s32 0, %v896
        %v898 = vrot.slane %v888, %v897
        %v899 = vlaneseq
        %v900 = vshrl.u32 %v899, 7
        %v901 = vsub.s32 0, %v900
        %v902 = vrot.slane %v892, %v901
        %905 = vrot.lane.b32.xlu0 %v898, 120
        %v906 = vpop.permute.xlu0 %905
        %907 = vrot.lane.b32.xlu0 %v902, 120
        %v908 = vpop.permute.xlu0 %907
        %v909 = vsel %vm593, %v906, %v908
        %v911 = vmul.f32 %v533, %v909
        %v912 = vmul.f32 %v541, %v909
        %v913 = vmul.f32 %v594, %v909
        %v914 = vmul.f32 %v595, %v909
        %v915 = vmul.f32 %v605, %v909
        %v916 = vlaneseq
        %v917 = vshrl.u32 %v916, 7
        %v918 = vsub.s32 1, %v917
        %v919 = vrot.slane %v413, %v918
        %v920 = vlaneseq
        %v921 = vshrl.u32 %v920, 7
        %v922 = vsub.s32 3, %v921
        %v923 = vrot.slane %v413, %v922
        %v926 = vlaneseq
        %v927 = vshrl.u32 %v926, 7
        %v928 = vsub.s32 1, %v927
        %v929 = vrot.slane %v919, %v928
        %v930 = vlaneseq
        %v931 = vshrl.u32 %v930, 7
        %v932 = vsub.s32 1, %v931
        %v933 = vrot.slane %v923, %v932
        %936 = vrot.lane.b32.xlu0 %v929, 120
        %v937 = vpop.permute.xlu0 %936
        %938 = vrot.lane.b32.xlu0 %v933, 120
        %v939 = vpop.permute.xlu0 %938
        %v940 = vsel %vm593, %v937, %v939
        %v942 = vmul.f32 %v533, %v940
        %v943 = vmul.f32 %v541, %v940
        %v944 = vmul.f32 %v594, %v940
        %v945 = vmul.f32 %v595, %v940
        %v946 = vmul.f32 %v605, %v940
        %v952 = vrot.slane %v942, 1
        %v953 = vrot.slane %v943, 1
        %v954 = vsel %vm532, %v952, %v953
        %v955 = vrot.slane %v944, 1
        %v956 = vsel %vm532, %v953, %v955
        %v957 = vrot.slane %v945, 1
        %v958 = vsel %vm532, %v955, %v957
        %v959 = vrot.slane %v946, 1
        %v960 = vsel %vm532, %v957, %v959
        %v966 = vadd.f32 %v911, %v954
        %v967 = vadd.f32 %v912, %v956
        %v968 = vadd.f32 %v913, %v958
        %v969 = vadd.f32 %v914, %v960
        %v970 = vadd.f32 %v915, %v959
        %971 = vrot.lane.b32.xlu0 %v898, 119
        %v972 = vpop.permute.xlu0 %971
        %973 = vrot.lane.b32.xlu0 %v902, 119
        %v974 = vpop.permute.xlu0 %973
        %vm975 = vcmask 973824
        %v976 = vsel %vm975, %v972, %v974
        %v978 = vmul.f32 %v533, %v976
        %v979 = vmul.f32 %v541, %v976
        %v980 = vmul.f32 %v594, %v976
        %v981 = vmul.f32 %v595, %v976
        %v982 = vmul.f32 %v605, %v976
        %v988 = vrot.slane %v978, 2
        %v989 = vrot.slane %v979, 2
        %v990 = vsel %vm530, %v988, %v989
        %v991 = vrot.slane %v980, 2
        %v992 = vsel %vm530, %v989, %v991
        %v993 = vrot.slane %v981, 2
        %v994 = vsel %vm530, %v991, %v993
        %v995 = vrot.slane %v982, 2
        %v996 = vsel %vm530, %v993, %v995
        %v1002 = vadd.f32 %v966, %v990
        %v1003 = vadd.f32 %v967, %v992
        %v1004 = vadd.f32 %v968, %v994
        %v1005 = vadd.f32 %v969, %v996
        %v1006 = vadd.f32 %v970, %v995
        %1007 = vrot.lane.b32.xlu0 %v929, 119
        %v1008 = vpop.permute.xlu0 %1007
        %1009 = vrot.lane.b32.xlu0 %v933, 119
        %v1010 = vpop.permute.xlu0 %1009
        %v1011 = vsel %vm975, %v1008, %v1010
        %v1013 = vmul.f32 %v533, %v1011
        %v1014 = vmul.f32 %v541, %v1011
        %v1015 = vmul.f32 %v594, %v1011
        %v1016 = vmul.f32 %v595, %v1011
        %v1017 = vmul.f32 %v605, %v1011
        %v1023 = vrot.slane %v1013, 3
        %v1024 = vrot.slane %v1014, 3
        %v1025 = vsel %vm528, %v1023, %v1024
        %v1026 = vrot.slane %v1015, 3
        %v1027 = vsel %vm528, %v1024, %v1026
        %v1028 = vrot.slane %v1016, 3
        %v1029 = vsel %vm528, %v1026, %v1028
        %v1030 = vrot.slane %v1017, 3
        %v1031 = vsel %vm528, %v1028, %v1030
        %v1037 = vadd.f32 %v1002, %v1025
        %v1038 = vadd.f32 %v1003, %v1027
        %v1039 = vadd.f32 %v1004, %v1029
        %v1040 = vadd.f32 %v1005, %v1031
        %v1041 = vadd.f32 %v1006, %v1030
        %v1042 = vrsqrt.pop %v861
        %v1043 = vmul.f32 %v861, %v1042
        %vm1044 = vcmp.eq.f32.partialorder %v861, inf
        %v1045 = vsel %vm1044, %v861, %v1043
        %vm1046 = vcmp.eq.f32.partialorder %v861, 0.0
        %v1047 = vand.u32 %v861, 2147483648
        %v1048 = vsel %vm1046, %v1047, %v1045
        %v1049 = vrsqrt.pop %v866
        %v1050 = vmul.f32 %v866, %v1049
        %vm1051 = vcmp.eq.f32.partialorder %v866, inf
        %v1052 = vsel %vm1051, %v866, %v1050
        %vm1053 = vcmp.eq.f32.partialorder %v866, 0.0
        %v1054 = vand.u32 %v866, 2147483648
        %v1055 = vsel %vm1053, %v1054, %v1052
        %v1056 = vrsqrt.pop %v871
        %v1057 = vmul.f32 %v871, %v1056
        %vm1058 = vcmp.eq.f32.partialorder %v871, inf
        %v1059 = vsel %vm1058, %v871, %v1057
        %vm1060 = vcmp.eq.f32.partialorder %v871, 0.0
        %v1061 = vand.u32 %v871, 2147483648
        %v1062 = vsel %vm1060, %v1061, %v1059
        %v1063 = vrsqrt.pop %v876
        %v1064 = vmul.f32 %v876, %v1063
        %vm1065 = vcmp.eq.f32.partialorder %v876, inf
        %v1066 = vsel %vm1065, %v876, %v1064
        %vm1067 = vcmp.eq.f32.partialorder %v876, 0.0
        %v1068 = vand.u32 %v876, 2147483648
        %v1069 = vsel %vm1067, %v1068, %v1066
        %v1070 = vrsqrt.pop %v881
        %v1071 = vmul.f32 %v881, %v1070
        %vm1072 = vcmp.eq.f32.partialorder %v881, inf
        %v1073 = vsel %vm1072, %v881, %v1071
        %vm1074 = vcmp.eq.f32.partialorder %v881, 0.0
        %v1075 = vand.u32 %v881, 2147483648
        %v1076 = vsel %vm1074, %v1075, %v1073
        %v1077 = vadd.f32 %v1048, 1e-08
        %v1078 = vadd.f32 %v1055, 1e-08
        %v1079 = vadd.f32 %v1062, 1e-08
        %v1080 = vadd.f32 %v1069, 1e-08
        %v1081 = vadd.f32 %v1076, 1e-08
        %v1082 = vrsqrt.pop %v765
        %v1083 = vmul.f32 %v765, %v1082
        %vm1084 = vcmp.eq.f32.partialorder %v765, inf
        %v1085 = vsel %vm1084, %v765, %v1083
        %vm1086 = vcmp.eq.f32.partialorder %v765, 0.0
        %v1087 = vand.u32 %v765, 2147483648
        %v1088 = vsel %vm1086, %v1087, %v1085
        %v1089 = vadd.f32 %v1088, 1e-08
        %v1091 = vlaneseq
        %v1092 = vshrl.u32 %v1091, 7
        %v1093 = vsub.s32 0, %v1092
        %v1094 = vrot.slane %v1089, %v1093
        %v1095 = vlaneseq
        %v1096 = vshrl.u32 %v1095, 7
        %v1097 = vsub.s32 2, %v1096
        %v1098 = vrot.slane %v1089, %v1097
        %v1101 = vlaneseq
        %v1102 = vshrl.u32 %v1101, 7
        %v1103 = vsub.s32 0, %v1102
        %v1104 = vrot.slane %v1094, %v1103
        %v1105 = vlaneseq
        %v1106 = vshrl.u32 %v1105, 7
        %v1107 = vsub.s32 0, %v1106
        %v1108 = vrot.slane %v1098, %v1107
        %1111 = vrot.lane.b32.xlu0 %v1104, 120
        %v1112 = vpop.permute.xlu0 %1111
        %1113 = vrot.lane.b32.xlu0 %v1108, 120
        %v1114 = vpop.permute.xlu0 %1113
        %v1115 = vsel %vm593, %v1112, %v1114
        %v1117 = vmul.f32 %v1077, %v1115
        %v1118 = vmul.f32 %v1078, %v1115
        %v1119 = vmul.f32 %v1079, %v1115
        %v1120 = vmul.f32 %v1080, %v1115
        %v1121 = vmul.f32 %v1081, %v1115
        %v1122 = vrcp.pop %v1117
        %v1123 = vmul.f32 %v1037, %v1122
        %v1124 = vrcp.pop %v1118
        %v1125 = vmul.f32 %v1038, %v1124
        %v1126 = vrcp.pop %v1119
        %v1127 = vmul.f32 %v1039, %v1126
        %v1128 = vrcp.pop %v1120
        %v1129 = vmul.f32 %v1040, %v1128
        %v1130 = vrcp.pop %v1121
        %v1131 = vmul.f32 %v1041, %v1130
        %1132 = vst [vmem:[%s404] sm:$0xff] %v1123
        %1133 = vst [vmem:[%s404 + $0x8] sm:$0xff] %v1125
        %1134 = vst [vmem:[%s404 + $0x10] sm:$0xff] %v1127
        %1135 = vst [vmem:[%s404 + $0x18] sm:$0xff] %v1129
        %1136 = vst [vmem:[%s404 + $0x20] sm:$0x1] %v1131
        %s1137 = sand.u32 %s197, 1
        %s1138 = scalar_lea.sflag [#allocation4], %s1137
        %s1139 = sand.u32 %s197, 1
        %s1140 = smul.addr %s1139, 16
        %s1141 = scalar_lea.vmem [#allocation8], %s1140
        %p1142 = scmp.lt.s32.totalorder %s33, 1
        %s1143 = scalar_select %p1142, %s33, 1
        %p1144 = scmp.lt.s32.totalorder %s34, 3
        %s1145 = scalar_select %p1144, %s34, 3
        %p1146 = scmp.lt.s32.totalorder %s35, 0
        %s1147 = scalar_select %p1146, %s35, 0
        %s1148 = smul.addr %s1145, 5
        %s1149 = sadd.s32 %s1147, %s1148
        %s1150 = smul.addr %s1143, 20
        %s1151 = sadd.s32 %s1149, %s1150
        %s1152 = smul.addr %s1151, 8
        %s1153 = scalar_lea.vmem %s7, %s1152
        // Predicated region
        $region57: #{tpu_custom_call.1} parent=43 // pred_check
          %p1154 = pneg %p207
        $region58: #{tpu_custom_call.1} parent=43 // pred_check_branch
          %1156 = sbr.rel (%p1154) target = $region60
        $region59: #{tpu_custom_call.1} parent=43 // pred_region
          %s1158 = ssub.s32 256, 256
          %1159 = vsyncadd %s1138, %s1158
          %s1160 = smul.addr %s34, 2
          %s1161 = sadd.s32 %s35, %s1160
          %s1162 = smul.addr %s33, 8
          %s1163 = sadd.s32 %s1161, %s1162
          %s1164 = smul.addr %s1163, 128
          %s1165 = scalar_lea.hbm %s6, %s1164
          %s1166 = sshll.u32 %s1141, 4
          %s1167 = int_to_ptr.vmem [resolvable:$true] %s1166
          %1172 = dma.vmem_to_hbm [thread:$0]  %s1167, 256, %s1165, %s1138, 128, 128, 8
        $region60: #{tpu_custom_call.1} parent=43 // pred_fallthru
          _
        // Predicated region
        $region61: #{tpu_custom_call.1} parent=43 // pred_check
          %p1173 = pneg %p237
        $region62: #{tpu_custom_call.1} parent=43 // pred_check_branch
          %1175 = sbr.rel (%p1173) target = $region64
        $region63: #{tpu_custom_call.1} parent=43 // pred_region
          _
        $region64: #{tpu_custom_call.1} parent=43 // pred_fallthru
          _
      $region44: #{tpu_custom_call.1} parent=5 // pred_fallthru
        _
      %p1176 = scmp.le.s32.totalorder 2, %s23
      // Predicated region
      $region65: #{tpu_custom_call.1} parent=5 // pred_check
        %p1177 = pneg %p1176
      $region66: #{tpu_custom_call.1} parent=5 // pred_check_branch
        %1179 = sbr.rel (%p1177) target = $region68
      $region67: #{tpu_custom_call.1} parent=5 // pred_region
        %s1180 = ssub.s32 %s23, 2
        // Predicated region
        $region69: #{tpu_custom_call.1} parent=67 // pred_check
          %p1181 = pneg %p213
        $region70: #{tpu_custom_call.1} parent=67 // pred_check_branch
          %1183 = sbr.rel (%p1181) target = $region72
        $region71: #{tpu_custom_call.1} parent=67 // pred_region
          %s1184 = sand.u32 %s198, 1
          %s1185 = scalar_lea.sflag [#allocation4], %s1184
          %s1186 = sand.u32 %s198, 1
          %s1187 = smul.addr %s1186, 16
          %s1188 = scalar_lea.vmem [#allocation8], %s1187
          %1189 = dma.done %s1185, 256
        $region72: #{tpu_custom_call.1} parent=67 // pred_fallthru
          _
        // Predicated region
        $region73: #{tpu_custom_call.1} parent=67 // pred_check
          %p1190 = pneg %p243
        $region74: #{tpu_custom_call.1} parent=67 // pred_check_branch
          %1192 = sbr.rel (%p1190) target = $region76
        $region75: #{tpu_custom_call.1} parent=67 // pred_region
          %p1193 = scmp.lt.s32.totalorder %s36, 1
          %s1194 = scalar_select %p1193, %s36, 1
          %p1195 = scmp.lt.s32.totalorder %s37, 3
          %s1196 = scalar_select %p1195, %s37, 3
          %p1197 = scmp.lt.s32.totalorder %s38, 0
          %s1198 = scalar_select %p1197, %s38, 0
          %s1199 = smul.addr %s1196, 5
          %s1200 = sadd.s32 %s1198, %s1199
          %s1201 = smul.addr %s1194, 20
          %s1202 = sadd.s32 %s1200, %s1201
          %s1203 = smul.addr %s1202, 8
          %s1204 = scalar_lea.vmem %s7, %s1203
        $region76: #{tpu_custom_call.1} parent=67 // pred_fallthru
          _
      $region68: #{tpu_custom_call.1} parent=5 // pred_fallthru
        _
    $region6: #{tpu_custom_call.1} parent=1 // loop_footer
      %s27 = sadd.s32 1, %s23
    $region7: #{tpu_custom_call.1} parent=1 // loop_footer_branch
      %22 = sbr.rel target = $region3
    $region8: #{tpu_custom_call.1} parent=1 // loop_exit
      _
    %1205 = vsyncpa [#allocation3], 1
    %s1206 = scalar_lea.sflag [#allocation3], 1
    %1207 = vsyncpa %s1206, 1
    %1208 = vsyncpa [#allocation6], 1
    %s1209 = scalar_lea.sflag [#allocation6], 1
    %1210 = vsyncpa %s1209, 1
    %1211 = vsyncpa [#allocation4], 1
    %s1212 = scalar_lea.sflag [#allocation4], 1
    %1213 = vsyncpa %s1212, 1

</llo_original>
